<compile_context>
chip_gen: v5e
topology: v5e:2x2
jax: 0.10.0
libtpu: 0.0.40
codegen_flags: <defaults>
</compile_context>

<pallas_src>
import functools
import math

import jax
import jax.numpy as jnp
from jax.experimental import pallas as pl
from jax.experimental.pallas import tpu as pltpu

_RCE_CAP = -math.log(1e-7)  # = -log(clip floor); rce_row = min(ce_row, _RCE_CAP)


def _sce_kernel(params_ref, logits_ref, targets_ref, out_ref, acc_ref, *,
                n_rows, tile_n, tiles_per_split):
    s = pl.program_id(0)          # split (parallel) axis
    i = pl.program_id(1)          # tile (arbitrary / reduction) axis

    @pl.when(i == 0)
    def _init():
        acc_ref[0] = jnp.float32(0.0)

    alpha = params_ref[0]
    beta = params_ref[1]

    logits = logits_ref[...].astype(jnp.float32)            # (tile_n, C) f32 in-register
    tgt = targets_ref[...]                                   # (tile_n, 1) int32
    tn, c = logits.shape

    # Numerically stable log-sum-exp along the class (lane) axis.
    m = jnp.max(logits, axis=1, keepdims=True)               # (tile_n, 1)
    shifted = logits - m
    lse = jnp.log(jnp.sum(jnp.exp(shifted), axis=1, keepdims=True))   # (tile_n, 1)

    # shifted logit at the target class via masked select + reduce (no one-hot array).
    class_iota = jax.lax.broadcasted_iota(jnp.int32, (tn, c), 1)
    tgt_shift = jnp.sum(jnp.where(class_iota == tgt, shifted, 0.0),
                        axis=1, keepdims=True)                # (tile_n, 1)

    ce_row = lse - tgt_shift                                  # -log_softmax[target]
    rce_row = jnp.minimum(ce_row, jnp.float32(_RCE_CAP))      # -log(clip(softmax[t],1e-7,1))

    # Mask rows past the logical batch size (partial last tile / padded grid).
    row_iota = jax.lax.broadcasted_iota(jnp.int32, (tn, 1), 0)
    global_row = (s * tiles_per_split + i) * tile_n + row_iota
    valid = global_row < n_rows
    loss_rows = jnp.where(valid, alpha * ce_row + beta * rce_row, 0.0)

    acc_ref[0] += jnp.sum(loss_rows)

    @pl.when(i == tiles_per_split - 1)
    def _finalize():
        # Lane-dense write of this split's partial sum; wrapper reads [s, 0, 0].
        out_ref[...] = jnp.full(out_ref.shape, acc_ref[0], dtype=jnp.float32)


def _choose_tile_n(n_rows, n_classes, itemsize):
    """Pick a batch tile that keeps one lane-padded f32 tile <= ~4 MiB."""
    c_pad = ((n_classes + 127) // 128) * 128     # VMEM lane-pads the class dim
    budget_bytes = 4 * 1024 * 1024               # per logits tile (f32 upcast worst case)
    max_rows = max(16, budget_bytes // (c_pad * 4))
    tile = min(n_rows, 1024, max_rows)
    if tile >= n_rows:
        return n_rows                            # full-array block is always legal
    gran = 16 if itemsize < 4 else 8             # bf16 sublane packing wants x16
    return max(gran, (tile // gran) * gran)


def symmetric_cross_entropy(logits, targets, *, alpha=0.1, beta=1.0, tile_n=None):
    """Mean-reduced symmetric cross entropy. logits: (N, C), targets: (N,) int."""
    n, c = logits.shape
    targets_2d = targets.astype(jnp.int32).reshape(n, 1)          # glue: reshape only
    params = jnp.array([alpha, beta], dtype=jnp.float32)          # runtime scalars

    if tile_n is None:
        tile_n = _choose_tile_n(n, c, jnp.dtype(logits.dtype).itemsize)
    tile_n = min(tile_n, n)

    num_tiles = -(-n // tile_n)
    # Split the tile loop in two when it divides evenly: on v7x each TensorCore
    # streams its own half (axis marked "parallel"); harmless on 1-TC chips.
    num_splits = 2 if (num_tiles >= 2 and num_tiles % 2 == 0) else 1
    tiles_per_split = num_tiles // num_splits

    kernel = functools.partial(_sce_kernel, n_rows=n, tile_n=tile_n,
                               tiles_per_split=tiles_per_split)

    out = pl.pallas_call(
        kernel,
        out_shape=jax.ShapeDtypeStruct((num_splits, 8, 128), jnp.float32),
        grid_spec=pltpu.PrefetchScalarGridSpec(
            num_scalar_prefetch=0,
            grid=(num_splits, tiles_per_split),
            in_specs=[
                pl.BlockSpec(memory_space=pltpu.SMEM),                   # [alpha, beta]
                pl.BlockSpec((tile_n, c),
                             lambda s, i: (s * tiles_per_split + i, 0)),  # logits tile
                pl.BlockSpec((tile_n, 1),
                             lambda s, i: (s * tiles_per_split + i, 0)),  # targets tile
            ],
            out_specs=pl.BlockSpec((1, 8, 128), lambda s, i: (s, 0, 0)),  # per-split partial
            scratch_shapes=[pltpu.SMEM((1,), jnp.float32)],               # running sum
        ),
        compiler_params=pltpu.CompilerParams(
            dimension_semantics=("parallel", "arbitrary"),
            vmem_limit_bytes=32 * 1024 * 1024,
        ),
    )(params, logits, targets_2d)

    # Final add across splits + batch mean (trivial scalar glue).
    return jnp.sum(out[:, 0, 0]) / jnp.float32(n)


def _reference(logits, targets, alpha=0.1, beta=1.0, num_classes=5):
    # Pure-JAX mirror of the PyTorch module (reduction='mean').
    lf = logits.astype(jnp.float32)
    onehot = jnp.eye(num_classes, dtype=jnp.float32)[targets]
    logp = jax.nn.log_softmax(lf, axis=1)
    ce = jnp.mean(-jnp.sum(onehot * logp, axis=1))
    sm = jax.nn.softmax(lf, axis=1)
    rce = jnp.mean(-jnp.sum(onehot * jnp.log(jnp.clip(sm, 1e-7, 1.0)), axis=1))
    return alpha * ce + beta * rce


if __name__ == "__main__":
    key = jax.random.PRNGKey(0)

    # Test 1: module's natural small shape (batch=8, num_classes=5), f32, single tile.
    k1, k2 = jax.random.split(key)
    n, c = 8, 5
    logits = jax.random.normal(k1, (n, c), dtype=jnp.float32) * 2.0
    targets = jax.random.randint(k2, (n,), 0, c, dtype=jnp.int32)
    loss = jax.block_until_ready(symmetric_cross_entropy(logits, targets, alpha=0.1, beta=1.0))
    ref = _reference(logits, targets, 0.1, 1.0, c)
    assert jnp.allclose(loss, ref, rtol=1e-5, atol=1e-5), (loss, ref)

    # Test 2: tiled grid with a partial (masked) last tile, single split.
    k3, k4 = jax.random.split(k1)
    n2, c2 = 40, 5
    logits2 = jax.random.normal(k3, (n2, c2), dtype=jnp.float32) * 3.0
    targets2 = jax.random.randint(k4, (n2,), 0, c2, dtype=jnp.int32)
    loss2 = jax.block_until_ready(
        symmetric_cross_entropy(logits2, targets2, alpha=0.1, beta=1.0, tile_n=16))
    ref2 = _reference(logits2, targets2, 0.1, 1.0, c2)
    assert jnp.allclose(loss2, ref2, rtol=1e-5, atol=1e-5), (loss2, ref2)

    # Test 3: even tile count -> 2-way "parallel" split, bf16 storage path.
    k5, k6 = jax.random.split(k2)
    n3, c3 = 64, 5
    logits3 = (jax.random.normal(k5, (n3, c3), dtype=jnp.float32) * 2.0).astype(jnp.bfloat16)
    targets3 = jax.random.randint(k6, (n3,), 0, c3, dtype=jnp.int32)
    loss3 = jax.block_until_ready(
        symmetric_cross_entropy(logits3, targets3, alpha=0.5, beta=2.0, tile_n=16))
    ref3 = _reference(logits3, targets3, 0.5, 2.0, c3)
    assert jnp.allclose(loss3, ref3, rtol=1e-5, atol=1e-5), (loss3, ref3)

    print("KERNEL_OK")
</pallas_src>

<mosaic_0001>
module attributes {stable_mosaic.version = 11 : i64} {
  func.func @_sce_kernel(%arg0: i32, %arg1: i32, %arg2: memref<2xf32, #tpu.memory_space<smem>>, %arg3: memref<8x5xf32, #tpu.memory_space<vmem>>, %arg4: memref<8x1xi32, #tpu.memory_space<vmem>>, %arg5: memref<1x8x128xf32, #tpu.memory_space<vmem>>, %arg6: memref<1xf32, #tpu.memory_space<smem>>) attributes {dimension_semantics = [#tpu.dimension_semantics<parallel>, #tpu.dimension_semantics<arbitrary>], iteration_bounds = array<i64: 1, 1>, scalar_prefetch = 0 : i64, scratch_operands = 1 : i64, tpu.core_type = #tpu.core_type<tc>, window_params = [{transform_indices = @transform_0, window_bounds = array<i64: 2>}, {transform_indices = @transform_1, window_bounds = array<i64: 8, 5>}, {transform_indices = @transform_2, window_bounds = array<i64: 8, 1>}, {transform_indices = @transform_3, window_bounds = array<i64: 1, 8, 128>}]} {
    %c0_i32 = arith.constant 0 : i32
    %0 = arith.cmpi eq, %arg1, %c0_i32 : i32
    %1 = arith.extui %0 : i1 to i32
    %c0_i32_0 = arith.constant 0 : i32
    %2 = arith.cmpi ne, %1, %c0_i32_0 : i32
    scf.if %2 {
      %cst_16 = arith.constant 0.000000e+00 : f32
      %c0_17 = arith.constant 0 : index
      %50 = memref.load %arg6[%c0_17] : memref<1xf32, #tpu.memory_space<smem>>
      memref.store %cst_16, %arg6[%c0_17] : memref<1xf32, #tpu.memory_space<smem>>
    } else {
    }
    %c0 = arith.constant 0 : index
    %3 = memref.load %arg2[%c0] : memref<2xf32, #tpu.memory_space<smem>>
    %c1 = arith.constant 1 : index
    %4 = memref.load %arg2[%c1] : memref<2xf32, #tpu.memory_space<smem>>
    %c0_1 = arith.constant 0 : index
    %c0_2 = arith.constant 0 : index
    %5 = vector.load %arg3[%c0_1, %c0_2] : memref<8x5xf32, #tpu.memory_space<vmem>>, vector<8x5xf32>
    %c0_3 = arith.constant 0 : index
    %c0_4 = arith.constant 0 : index
    %6 = vector.load %arg4[%c0_3, %c0_4] : memref<8x1xi32, #tpu.memory_space<vmem>>, vector<8x1xi32>
    %cst = arith.constant dense<0xFF800000> : vector<8xf32>
    %7 = vector.multi_reduction <maximumf>, %5, %cst [1] : vector<8x5xf32> to vector<8xf32>
    %8 = vector.shape_cast %7 : vector<8xf32> to vector<8x1xf32>
    %9 = vector.broadcast %8 : vector<8x1xf32> to vector<8x5xf32>
    %10 = arith.subf %5, %9 : vector<8x5xf32>
    %11 = math.exp %10 : vector<8x5xf32>
    %cst_5 = arith.constant dense<0.000000e+00> : vector<8xf32>
    %12 = vector.multi_reduction <add>, %11, %cst_5 [1] : vector<8x5xf32> to vector<8xf32>
    %13 = vector.shape_cast %12 : vector<8xf32> to vector<8x1xf32>
    %14 = math.log %13 : vector<8x1xf32>
    %15 = tpu.iota {dimensions = array<i32: 1>} : vector<8x5xi32>
    %16 = vector.broadcast %6 : vector<8x1xi32> to vector<8x5xi32>
    %17 = arith.cmpi eq, %15, %16 : vector<8x5xi32>
    %cst_6 = arith.constant 0.000000e+00 : f32
    %18 = vector.broadcast %cst_6 : f32 to vector<8x5xf32>
    %19 = arith.select %17, %10, %18 : vector<8x5xi1>, vector<8x5xf32>
    %cst_7 = arith.constant dense<0.000000e+00> : vector<8xf32>
    %20 = vector.multi_reduction <add>, %19, %cst_7 [1] : vector<8x5xf32> to vector<8xf32>
    %21 = vector.shape_cast %20 : vector<8xf32> to vector<8x1xf32>
    %22 = arith.subf %14, %21 : vector<8x1xf32>
    %cst_8 = arith.constant 16.1180954 : f32
    %23 = vector.broadcast %cst_8 : f32 to vector<8x1xf32>
    %24 = arith.minimumf %22, %23 : vector<8x1xf32>
    %25 = tpu.iota {dimensions = array<i32: 0>} : vector<8x1xi32>
    %c1_i32 = arith.constant 1 : i32
    %26 = arith.muli %arg0, %c1_i32 : i32
    %27 = arith.addi %26, %arg1 : i32
    %c8_i32 = arith.constant 8 : i32
    %28 = arith.muli %27, %c8_i32 : i32
    %29 = vector.broadcast %28 : i32 to vector<8x1xi32>
    %30 = arith.addi %29, %25 : vector<8x1xi32>
    %c8_i32_9 = arith.constant 8 : i32
    %31 = vector.broadcast %c8_i32_9 : i32 to vector<8x1xi32>
    %32 = arith.cmpi slt, %30, %31 : vector<8x1xi32>
    %33 = vector.broadcast %3 : f32 to vector<8x1xf32>
    %34 = arith.mulf %33, %22 : vector<8x1xf32>
    %35 = vector.broadcast %4 : f32 to vector<8x1xf32>
    %36 = arith.mulf %35, %24 : vector<8x1xf32>
    %37 = arith.addf %34, %36 : vector<8x1xf32>
    %cst_10 = arith.constant 0.000000e+00 : f32
    %38 = vector.broadcast %cst_10 : f32 to vector<8x1xf32>
    %39 = arith.select %32, %37, %38 : vector<8x1xi1>, vector<8x1xf32>
    %c0_11 = arith.constant 0 : index
    %40 = memref.load %arg6[%c0_11] : memref<1xf32, #tpu.memory_space<smem>>
    %41 = vector.shape_cast %39 : vector<8x1xf32> to vector<1x8x1xf32>
    %cst_12 = arith.constant dense<0.000000e+00> : vector<1xf32>
    %42 = vector.multi_reduction <add>, %41, %cst_12 [1, 2] : vector<1x8x1xf32> to vector<1xf32>
    %43 = vector.shape_cast %42 : vector<1xf32> to vector<1x1x1xf32>
    %44 = vector.extract %43[0, 0, 0] : f32 from vector<1x1x1xf32>
    %45 = arith.addf %40, %44 : f32
    %c0_13 = arith.constant 0 : index
    %46 = memref.load %arg6[%c0_13] : memref<1xf32, #tpu.memory_space<smem>>
    memref.store %45, %arg6[%c0_13] : memref<1xf32, #tpu.memory_space<smem>>
    %c0_i32_14 = arith.constant 0 : i32
    %47 = arith.cmpi eq, %arg1, %c0_i32_14 : i32
    %48 = arith.extui %47 : i1 to i32
    %c0_i32_15 = arith.constant 0 : i32
    %49 = arith.cmpi ne, %48, %c0_i32_15 : i32
    scf.if %49 {
      %c0_16 = arith.constant 0 : index
      %50 = memref.load %arg6[%c0_16] : memref<1xf32, #tpu.memory_space<smem>>
      %51 = vector.broadcast %50 : f32 to vector<1x8x128xf32>
      %c0_17 = arith.constant 0 : index
      %c0_18 = arith.constant 0 : index
      %c0_19 = arith.constant 0 : index
      %52 = vector.load %arg5[%c0_17, %c0_18, %c0_19] : memref<1x8x128xf32, #tpu.memory_space<vmem>>, vector<1x8x128xf32>
      tpu.vector_store %arg5[%c0_17, %c0_18, %c0_19], %51 {strides = array<i32>} : memref<1x8x128xf32, #tpu.memory_space<vmem>>, vector<1x8x128xf32>,
    } else {
    }
    return
  }
  func.func @transform_0(%arg0: i32, %arg1: i32) -> i32 {
    %c0_i32 = arith.constant 0 : i32
    %c0_i32_0 = arith.constant 0 : i32
    return %c0_i32 : i32
  }
  func.func @transform_1(%arg0: i32, %arg1: i32) -> (i32, i32) {
    %c1_i32 = arith.constant 1 : i32
    %0 = arith.muli %arg0, %c1_i32 : i32
    %1 = arith.addi %0, %arg1 : i32
    %c0_i32 = arith.constant 0 : i32
    %c0_i32_0 = arith.constant 0 : i32
    return %1, %c0_i32 : i32, i32
  }
  func.func @transform_2(%arg0: i32, %arg1: i32) -> (i32, i32) {
    %c1_i32 = arith.constant 1 : i32
    %0 = arith.muli %arg0, %c1_i32 : i32
    %1 = arith.addi %0, %arg1 : i32
    %c0_i32 = arith.constant 0 : i32
    %c0_i32_0 = arith.constant 0 : i32
    return %1, %c0_i32 : i32, i32
  }
  func.func @transform_3(%arg0: i32, %arg1: i32) -> (i32, i32, i32) {
    %c0_i32 = arith.constant 0 : i32
    %c0_i32_0 = arith.constant 0 : i32
    %c0_i32_1 = arith.constant 0 : i32
    return %arg0, %c0_i32, %c0_i32_0 : i32, i32, i32
  }
}

</mosaic_0001>

<llo_original>
// kernel: tpu_custom_call.1
$region0: #{tpu_custom_call.1}
  #allocation0 [shape = 'u32[]', space=smem, size = 0x4, offset = 0x4, fixed_abs, tag = 'smem constant byte address 0x4 - core index']
  #allocation1 [shape = 'u32[72,128]{1,0:T(1,128)}', space=vmem, size = 0x9000, scoped, tag = 'internal scratch']
  #allocation2 [shape = 'f32[1]{0:T(128)}', space=smem, size = 0x200, scoped, tag = 'scratch operand']
  %s0 = inlined_call_operand.vmem [shape: f32[2], index: 0, kind: input, shape index: {}]
  %s1 = inlined_call_operand.vmem [shape: f32[8,5], index: 1, kind: input, shape index: {}]
  %s2 = inlined_call_operand.vmem [shape: s32[8,1], index: 2, kind: input, shape index: {}]
  %s3 = inlined_call_operand.hbm [shape: f32[1,8,128], index: 3, kind: output, shape index: {}]
  %s4 = sld [smem:[#allocation0]]
  $region34: #{tpu_custom_call.1} parent=0
    _
  %s6 = ssub.s32 1, %s4
  %s7 = scalar_select 0, %s6, %s4
  $region1: #{tpu_custom_call.1} parent=0
    #allocation3 [shape = 'u8[512]{0}', space=smem, size = 0x200, scoped, tag = 'input window, operand 0, single buffered']
    #allocation4 [shape = 's32[1]{0}', space=sflag, size = 0x4, scoped, tag = 'scoped memory for tpu_custom_call.1']
    #allocation5 [shape = 's32[1]{0}', space=sflag, size = 0x4, scoped, tag = 'scoped memory for tpu_custom_call.1']
    #allocation6 [shape = 'u8[4096]{0}', space=vmem, size = 0x1000, scoped, tag = 'output window, operand 0, single buffered']
    %8 = vsyncpa [#allocation5], 0
    %9 = vsyncpa [#allocation4], 0
    // Predicated region
    $region2: #{tpu_custom_call.1} parent=1 // pred_check
      _
    $region3: #{tpu_custom_call.1} parent=1 // pred_check_branch
      %11 = sbr.rel (0) target = $region5
    $region4: #{tpu_custom_call.1} parent=1 // pred_region
      %13 = vsyncadd [#allocation5], 0
      %s15 = sshll.u32 %s0, 4
      %s16 = int_to_ptr.vmem [resolvable:$true] %s15
      %18 = dma.vmem_to_smem %s16, 16, [#allocation3], [#allocation5]
    $region5: #{tpu_custom_call.1} parent=1 // pred_fallthru
      _
    // Predicated region
    $region6: #{tpu_custom_call.1} parent=1 // pred_check
      _
    $region7: #{tpu_custom_call.1} parent=1 // pred_check_branch
      %20 = sbr.rel (0) target = $region9
    $region8: #{tpu_custom_call.1} parent=1 // pred_region
      %s21 = sadd.s32 0, 0
      %p22 = scmp.lt.s32.totalorder %s21, 0
      %s23 = scalar_select %p22, %s21, 0
      %s24 = smul.addr %s23, 8
      %s25 = scalar_lea.vmem %s1, %s24
      %s26 = sadd.s32 0, 0
    $region9: #{tpu_custom_call.1} parent=1 // pred_fallthru
      _
    // Predicated region
    $region10: #{tpu_custom_call.1} parent=1 // pred_check
      _
    $region11: #{tpu_custom_call.1} parent=1 // pred_check_branch
      %28 = sbr.rel (0) target = $region13
    $region12: #{tpu_custom_call.1} parent=1 // pred_region
      %s29 = sadd.s32 0, 0
      %p30 = scmp.lt.s32.totalorder %s29, 0
      %s31 = scalar_select %p30, %s29, 0
      %s32 = smul.addr %s31, 8
      %s33 = scalar_lea.vmem %s2, %s32
      %s34 = sadd.s32 0, 0
    $region13: #{tpu_custom_call.1} parent=1 // pred_fallthru
      _
    // Predicated region
    $region14: #{tpu_custom_call.1} parent=1 // pred_check
      _
    $region15: #{tpu_custom_call.1} parent=1 // pred_check_branch
      %36 = sbr.rel (0) target = $region17
    $region16: #{tpu_custom_call.1} parent=1 // pred_region
      %38 = dma.done [#allocation5], 16
    $region17: #{tpu_custom_call.1} parent=1 // pred_fallthru
      _
    %39 = sfence
    %s40 = sadd.s32 0, 0
    %p41 = scmp.lt.s32.totalorder %s40, 0
    %s42 = scalar_select %p41, %s40, 0
    %s43 = smul.addr %s42, 8
    %s44 = scalar_lea.vmem %s1, %s43
    %s45 = sadd.s32 0, 0
    %p46 = scmp.lt.s32.totalorder %s45, 0
    %s47 = scalar_select %p46, %s45, 0
    %s48 = smul.addr %s47, 8
    %s49 = scalar_lea.vmem %s2, %s48
    %s50 = sadd.s32 0, 0
    %p51 = scmp.lt.s32.totalorder %s50, 0
    %s52 = scalar_select %p51, %s50, 0
    %s53 = smul.addr %s52, 8
    %s54 = scalar_lea.vmem %s1, %s53
    %s55 = sadd.s32 0, 0
    %s56 = sadd.s32 0, 0
    %p57 = scmp.lt.s32.totalorder %s56, 0
    %s58 = scalar_select %p57, %s56, 0
    %s59 = smul.addr %s58, 8
    %s60 = scalar_lea.vmem %s2, %s59
    %s61 = sadd.s32 0, 0
    %p62 = scmp.eq.s32.totalorder 0, 0
    // Predicated region
    $region18: #{tpu_custom_call.1} parent=1 // pred_check
      %p63 = pneg %p62
    $region19: #{tpu_custom_call.1} parent=1 // pred_check_branch
      %65 = sbr.rel (%p63) target = $region21
    $region20: #{tpu_custom_call.1} parent=1 // pred_region
      %s66 = scalar_lea.smem [#allocation2], 0
      %67 = sst [smem:[%s66]] 0.0
    $region21: #{tpu_custom_call.1} parent=1 // pred_fallthru
      _
    %s68 = sld [smem:[#allocation3]]
    %s69 = sld [smem:[#allocation3 + $0x1]]
    %v70 = vld [vmem:[%s54] sm:$0xff]
    %v71 = vld [vmem:[%s60] sm:$0xff]
    %vm72 = vcmask 39936
    %v73 = vsel %vm72, %v70, -inf
    %74 = vmax.xlane.f32.xlu0 %v73
    %v75 = vpop.xlane.xlu0 %74
    %v76 = vsub.f32 %v70, %v75
    %v77 = vmul.f32 %v76, 1.442695
    %v78 = vpow.pop %v77
    %v79 = vsel %vm72, %v78, 0.0
    %80 = vadd.xlane.f32.xlu0 %v79
    %v81 = vpop.xlane.xlu0 %80
    %v82 = vlog2.pop %v81
    %v83 = vmul.f32 %v82, 0.6931472
    %v84 = vlaneseq
    %v85 = vand.u32 %v84, 127
    %86 = vset.pattern.permute.xlu0 0
    %87 = vperm.xlu0 %86, %v71
    %v88 = vpop.permute.xlu0 %87
    %vm89 = vcmp.eq.s32.totalorder %v85, %v88
    %v90 = vsel %vm89, %v76, 0.0
    %v91 = vsel %vm72, %v90, 0.0
    %92 = vadd.xlane.f32.xlu0 %v91
    %v93 = vpop.xlane.xlu0 %92
    %v94 = vsub.f32 %v83, %v93
    %v95 = vmin.f32 %v94, 16.118095
    %v96 = vlaneseq
    %v97 = vshrl.u32 %v96, 7
    %s98 = sadd.s32 0, 0
    %s99 = smul.u32 %s98, 8
    %v100 = vstv %s99
    %v101 = vadd.s32 %v100, %v97
    %vm102 = vcmp.lt.s32.totalorder %v101, 8
    %v103 = vstv %s68
    %v104 = vmul.f32 %v103, %v94
    %v105 = vstv %s69
    %v106 = vmul.f32 %v105, %v95
    %v107 = vadd.f32 %v104, %v106
    %v108 = vsel %vm102, %v107, 0.0
    %s109 = sld [smem:[#allocation2]]
    %vm110 = vcmask 7168
    %v111 = vsel %vm110, %v108, 0.0
    %112 = vadd.xlane.f32.xlu0 %v111
    %v113 = vpop.xlane.xlu0 %112
    %v114 = vrot.slane %v113, 4
    %v115 = vadd.f32 %v113, %v114
    %v116 = vrot.slane %v115, 2
    %v117 = vadd.f32 %v115, %v116
    %v118 = vrot.slane %v117, 1
    %v119 = vadd.f32 %v117, %v118
    %s120 = vtos %v119
    %s121 = sadd.f32 %s109, %s120
    %s122 = scalar_lea.smem [#allocation2], 0
    %123 = sst [smem:[%s122]] %s121
    // Predicated region
    $region22: #{tpu_custom_call.1} parent=1 // pred_check
      %p124 = pneg %p62
    $region23: #{tpu_custom_call.1} parent=1 // pred_check_branch
      %126 = sbr.rel (%p124) target = $region25
    $region24: #{tpu_custom_call.1} parent=1 // pred_region
      %s127 = sld [smem:[#allocation2]]
      %v128 = vstv %s127
      %129 = vst [vmem:[#allocation6] sm:$0xff] %v128
    $region25: #{tpu_custom_call.1} parent=1 // pred_fallthru
      _
    // Predicated region
    $region26: #{tpu_custom_call.1} parent=1 // pred_check
      _
    $region27: #{tpu_custom_call.1} parent=1 // pred_check_branch
      %131 = sbr.rel (0) target = $region29
    $region28: #{tpu_custom_call.1} parent=1 // pred_region
      %133 = vsyncadd [#allocation4], 0
      %s135 = sshll.u32 [#allocation6], 4
      %s136 = int_to_ptr.vmem [resolvable:$true] %s135
      %s137 = sshll.u32 %s3, 4
      %s138 = int_to_ptr.hbm [resolvable:$true] %s137
      %140 = dma.vmem_to_hbm [thread:$0]  %s136, 128, %s138, [#allocation4]
    $region29: #{tpu_custom_call.1} parent=1 // pred_fallthru
      _
    // Predicated region
    $region30: #{tpu_custom_call.1} parent=1 // pred_check
      _
    $region31: #{tpu_custom_call.1} parent=1 // pred_check_branch
      %142 = sbr.rel (0) target = $region33
    $region32: #{tpu_custom_call.1} parent=1 // pred_region
      %144 = dma.done [#allocation4], 128
    $region33: #{tpu_custom_call.1} parent=1 // pred_fallthru
      _
    %145 = vsyncpa [#allocation4], 1
    %146 = vsyncpa [#allocation5], 1

</llo_original>
